<compile_context>
chip_gen: v5e
topology: v5e:2x2
jax: 0.10.0
libtpu: 0.0.40
codegen_flags: <defaults>
</compile_context>

<pallas_src>
import jax
import jax.numpy as jnp
from jax.experimental import pallas as pl
from jax.experimental.pallas import tpu as pltpu


# ---------------------------------------------------------------------------
# Pallas matmul kernels:  O = A @ B + bias   (bf16 operands on the MXU, f32 accumulate)
# ---------------------------------------------------------------------------
def _matmul_bias_kernel(a_ref, b_ref, bias_ref, o_ref):
    # Single K block per output tile: accumulate directly, no scratch needed.
    acc = jnp.dot(a_ref[...], b_ref[...], preferred_element_type=jnp.float32)
    o_ref[...] = (acc + bias_ref[...]).astype(o_ref.dtype)


def _matmul_bias_acc_kernel(a_ref, b_ref, bias_ref, o_ref, acc_ref):
    # Grid = (M, N, K) with K (reduction) innermost; f32 VMEM accumulator.
    @pl.when(pl.program_id(2) == 0)
    def _():
        acc_ref[...] = jnp.zeros_like(acc_ref)

    acc_ref[...] += jnp.dot(a_ref[...], b_ref[...],
                            preferred_element_type=jnp.float32)

    @pl.when(pl.program_id(2) == pl.num_programs(2) - 1)
    def _():
        o_ref[...] = (acc_ref[...] + bias_ref[...]).astype(o_ref.dtype)


# ---------------------------------------------------------------------------
# Tiling helpers
# ---------------------------------------------------------------------------
def _pick_tile(total, pref, align):
    """Largest multiple of `align` that divides `total` and is <= pref (else full dim)."""
    if total % align != 0 or total <= align:
        return total
    t = max((min(pref, total) // align) * align, align)
    while total % t != 0:
        t -= align
    return t


def _vmem_budget_and_tm_pref():
    """Per-generation VMEM budget (bytes) and preferred M tile."""
    try:
        phys = pltpu.get_tpu_info().vmem_capacity_bytes
    except Exception:
        phys = 64 * 1024 * 1024  # conservative fallback (v7x per-TC size)
    # v7x (64 MiB): ~38 MiB target.  v5e/v6e (128 MiB): ~96 MiB target.
    budget = max(int(phys * 0.6), phys - 32 * 1024 * 1024)
    budget = min(budget, phys - 8 * 1024 * 1024)
    tm_pref = 1024 if phys <= 64 * 1024 * 1024 else 2048
    return budget, tm_pref


def matmul_bias(a, b, bias, *, out_dtype=jnp.float32, compute_dtype=jnp.bfloat16,
                tk_max=2048, tn_max=512):
    """a: (M, K), b: (K, N), bias: (N,)  ->  (M, N) in out_dtype (f32 accumulation)."""
    M, K = a.shape
    K2, N = b.shape
    assert K == K2 and bias.shape == (N,)

    a = a.astype(compute_dtype)           # no-op if the wrapper already emitted bf16
    b = b.astype(compute_dtype)
    bias2d = bias.reshape(1, N).astype(jnp.float32)

    in_size = jnp.dtype(compute_dtype).itemsize
    out_size = jnp.dtype(out_dtype).itemsize

    vmem_budget, tm_pref = _vmem_budget_and_tm_pref()

    # N tile: prefer multiples of 256 (full-width MXU passes on v6e/v7x), else 128,
    # else the full dim (masked partial stores -- perf cliff, not a correctness issue).
    if N % 256 == 0:
        tn = _pick_tile(N, tn_max, 256)
    else:
        tn = _pick_tile(N, tn_max, 128)
    tk = _pick_tile(K, tk_max, 128)
    tm = _pick_tile(M, tm_pref, 8)

    def vmem_needed(tm_, tk_, tn_):
        k_grid_ = K // tk_
        by = 2 * tm_ * tk_ * in_size          # A tiles, double-buffered
        by += 2 * tk_ * tn_ * in_size         # weight tiles, double-buffered
        by += 2 * 8 * tn_ * 4                 # bias block (padded to 8 sublanes)
        by += 2 * tm_ * tn_ * out_size        # output tiles, double-buffered
        if k_grid_ > 1:
            by += tm_ * tn_ * 4               # f32 accumulator scratch
        return by

    # Shrink the M tile (then K tile) until the estimate fits the per-gen budget.
    while vmem_needed(tm, tk, tn) > vmem_budget and tm > 8:
        tm_pref = max(tm_pref // 2, 8)
        new_tm = _pick_tile(M, tm_pref, 8)
        if new_tm == tm:
            break
        tm = new_tm
    while vmem_needed(tm, tk, tn) > vmem_budget and tk > 128:
        new_tk = _pick_tile(K, max(tk // 2, 128), 128)
        if new_tk == tk:
            break
        tk = new_tk

    m_grid = M // tm
    n_grid = N // tn
    k_grid = K // tk
    vmem_limit = min(max(int(1.25 * vmem_needed(tm, tk, tn)), 16 * 1024 * 1024),
                     vmem_budget)

    if k_grid == 1:
        # M leading "parallel" axis (megacore splits patch rows, not weight columns).
        return pl.pallas_call(
            _matmul_bias_kernel,
            out_shape=jax.ShapeDtypeStruct((M, N), out_dtype),
            grid_spec=pltpu.PrefetchScalarGridSpec(
                num_scalar_prefetch=0,
                grid=(m_grid, n_grid),
                in_specs=[
                    pl.BlockSpec((tm, K), lambda i, j: (i, 0)),
                    pl.BlockSpec((K, tn), lambda i, j: (0, j)),   # independent of M
                    pl.BlockSpec((1, tn), lambda i, j: (0, j)),
                ],
                out_specs=pl.BlockSpec((tm, tn), lambda i, j: (i, j)),
            ),
            compiler_params=pltpu.CompilerParams(
                dimension_semantics=("parallel", "parallel"),
                vmem_limit_bytes=vmem_limit),
        )(a, b, bias2d)

    return pl.pallas_call(
        _matmul_bias_acc_kernel,
        out_shape=jax.ShapeDtypeStruct((M, N), out_dtype),
        grid_spec=pltpu.PrefetchScalarGridSpec(
            num_scalar_prefetch=0,
            grid=(m_grid, n_grid, k_grid),
            in_specs=[
                pl.BlockSpec((tm, tk), lambda i, j, k: (i, k)),
                pl.BlockSpec((tk, tn), lambda i, j, k: (k, j)),   # independent of M
                pl.BlockSpec((1, tn), lambda i, j, k: (0, j)),
            ],
            out_specs=pl.BlockSpec((tm, tn), lambda i, j, k: (i, j)),
            scratch_shapes=[pltpu.VMEM((tm, tn), jnp.float32)],
        ),
        compiler_params=pltpu.CompilerParams(
            dimension_semantics=("parallel", "parallel", "arbitrary"),
            vmem_limit_bytes=vmem_limit),
    )(a, b, bias2d)


# ---------------------------------------------------------------------------
# Depthwise-separable patch embedding forward.
# ---------------------------------------------------------------------------
def depthwise_separable_patch_embedding(x, dw_w, dw_b, pw_w, pw_b,
                                        *, kernel_size=16, stride=16, padding=1,
                                        out_dtype=jnp.float32,
                                        compute_dtype=jnp.bfloat16):
    """x: (B, C, H, W); dw_w: (C, 1, k, k); dw_b: (C,); pw_w: (OUT, C); pw_b: (OUT,)
    returns (B, n_patches, OUT) == PyTorch `out.flatten(2).transpose(2, 1)`."""
    assert kernel_size == stride, "im2col fast path assumes non-overlapping patches"
    B, C, H, W = x.shape
    OUT = pw_w.shape[0]
    k = kernel_size
    out_h = (H + 2 * padding - k) // stride + 1
    out_w = (W + 2 * padding - k) // stride + 1
    n_patches = out_h * out_w
    M = B * n_patches

    # im2col emitted directly in bf16 (the cast fuses with the pad/reshape/transpose,
    # halving the materialized patch buffer and removing one full HBM pass).
    xc = x.astype(compute_dtype)
    xp = jnp.pad(xc, ((0, 0), (0, 0), (padding, padding), (padding, padding)))
    xp = xp[:, :, :out_h * stride, :out_w * stride]
    patches = (xp.reshape(B, C, out_h, k, out_w, k)
                 .transpose(0, 2, 4, 1, 3, 5)            # (B, oh, ow, C, kh, kw)
                 .reshape(M, C * k * k))

    # Pad patch rows to a multiple of 8 so the M tiling obeys the (8, 128) rule.
    M_pad = ((M + 7) // 8) * 8
    if M_pad != M:
        patches = jnp.pad(patches, ((0, M_pad - M), (0, 0)))

    # Fold depthwise + pointwise conv into one matmul (f32 fold, bf16 on the MXU):
    #   Weff[(c, kh, kw), d] = pw_w[d, c] * dw_w[c, 0, kh, kw]
    #   beff[d]              = pw_b[d] + sum_c pw_w[d, c] * dw_b[c]
    wd = dw_w.reshape(C, k * k).astype(jnp.float32)
    weff = (pw_w.astype(jnp.float32)[:, :, None] * wd[None, :, :]
            ).transpose(1, 2, 0).reshape(C * k * k, OUT).astype(compute_dtype)
    beff = pw_b + pw_w @ dw_b

    out = matmul_bias(patches, weff, beff,
                      out_dtype=out_dtype, compute_dtype=compute_dtype)
    if M_pad != M:
        out = out[:M]
    return out.reshape(B, n_patches, OUT)


# ---------------------------------------------------------------------------
# Plain-XLA f32 reference (exact conv path) used only for a loose sanity check.
# ---------------------------------------------------------------------------
def _reference(x, dw_w, dw_b, pw_w, pw_b, *, padding=1, stride=16):
    C = x.shape[1]
    OUT = pw_w.shape[0]
    y = jax.lax.conv_general_dilated(
        x, dw_w, window_strides=(stride, stride),
        padding=((padding, padding), (padding, padding)),
        dimension_numbers=("NCHW", "OIHW", "NCHW"),
        feature_group_count=C)
    y = y + dw_b[None, :, None, None]
    z = jax.lax.conv_general_dilated(
        y, pw_w.reshape(OUT, C, 1, 1), window_strides=(1, 1), padding="VALID",
        dimension_numbers=("NCHW", "OIHW", "NCHW"))
    z = z + pw_b[None, :, None, None]
    B = z.shape[0]
    return z.reshape(B, OUT, -1).transpose(0, 2, 1)      # flatten(2).transpose(2,1)


if __name__ == "__main__":
    key = jax.random.PRNGKey(0)
    kx, k1, k2, k3, k4 = jax.random.split(key, 5)

    B, C, H, W = 2, 3, 64, 64          # (64+2-16)//16+1 = 4  ->  4x4 = 16 patches
    OUT = 256                          # out_channels (multiple of 128/256 -> lane-dense)
    K = 16                             # kernel_size == stride

    x = jax.random.normal(kx, (B, C, H, W), jnp.float32)
    dw_w = 0.05 * jax.random.normal(k1, (C, 1, K, K), jnp.float32)
    dw_b = 0.05 * jax.random.normal(k2, (C,), jnp.float32)
    pw_w = 0.05 * jax.random.normal(k3, (OUT, C), jnp.float32)
    pw_b = 0.05 * jax.random.normal(k4, (OUT,), jnp.float32)

    fwd = jax.jit(depthwise_separable_patch_embedding)
    out = jax.block_until_ready(fwd(x, dw_w, dw_b, pw_w, pw_b))

    n_patches = ((H + 2 - K) // K + 1) ** 2
    assert out.shape == (B, n_patches, OUT), out.shape
    assert out.dtype == jnp.float32
    assert bool(jnp.all(jnp.isfinite(out)))

    # Loose check vs the exact f32 conv reference (kernel feeds the MXU bf16, accumulates f32).
    ref = _reference(x, dw_w, dw_b, pw_w, pw_b, padding=1, stride=K)
    err = float(jnp.max(jnp.abs(out - ref)))
    scale = float(jnp.max(jnp.abs(ref))) + 1e-6
    assert err / scale < 5e-2, (err, scale)

    # Exercise the bf16-output fast path (cuts the dominant HBM writeback ~2x).
    fwd_bf16 = jax.jit(lambda *a: depthwise_separable_patch_embedding(
        *a, out_dtype=jnp.bfloat16))
    out_bf16 = jax.block_until_ready(fwd_bf16(x, dw_w, dw_b, pw_w, pw_b))
    assert out_bf16.shape == (B, n_patches, OUT) and out_bf16.dtype == jnp.bfloat16
    err_bf16 = float(jnp.max(jnp.abs(out_bf16.astype(jnp.float32) - ref)))
    assert err_bf16 / scale < 1e-1, (err_bf16, scale)

    print("KERNEL_OK")
</pallas_src>

<mosaic_0001>
module attributes {stable_mosaic.version = 11 : i64} {
  func.func @_matmul_bias_kernel(%arg0: i32, %arg1: i32, %arg2: memref<32x768xbf16, #tpu.memory_space<vmem>>, %arg3: memref<768x256xbf16, #tpu.memory_space<vmem>>, %arg4: memref<1x256xf32, #tpu.memory_space<vmem>>, %arg5: memref<32x256xf32, #tpu.memory_space<vmem>>) attributes {dimension_semantics = [#tpu.dimension_semantics<parallel>, #tpu.dimension_semantics<parallel>], iteration_bounds = array<i64: 1, 1>, scalar_prefetch = 0 : i64, scratch_operands = 0 : i64, tpu.core_type = #tpu.core_type<tc>, window_params = [{transform_indices = @transform_0, window_bounds = array<i64: 32, 768>}, {transform_indices = @transform_1, window_bounds = array<i64: 768, 256>}, {transform_indices = @transform_2, window_bounds = array<i64: 1, 256>}, {transform_indices = @transform_3, window_bounds = array<i64: 32, 256>}]} {
    %c0 = arith.constant 0 : index
    %c0_0 = arith.constant 0 : index
    %0 = vector.load %arg2[%c0, %c0_0] : memref<32x768xbf16, #tpu.memory_space<vmem>>, vector<32x768xbf16>
    %c0_1 = arith.constant 0 : index
    %c0_2 = arith.constant 0 : index
    %1 = vector.load %arg3[%c0_1, %c0_2] : memref<768x256xbf16, #tpu.memory_space<vmem>>, vector<768x256xbf16>
    %cst = arith.constant dense<0.000000e+00> : vector<32x256xf32>
    %2 = tpu.matmul %0, %1, %cst {dimension_numbers = #tpu.dot_dimension_numbers<[1], [0], [0], [1], [0, 0, 1, 1], [], []>} : vector<32x768xbf16>, vector<768x256xbf16>, vector<32x256xf32> -> vector<32x256xf32>
    %c0_3 = arith.constant 0 : index
    %c0_4 = arith.constant 0 : index
    %3 = vector.load %arg4[%c0_3, %c0_4] : memref<1x256xf32, #tpu.memory_space<vmem>>, vector<1x256xf32>
    %4 = vector.broadcast %3 : vector<1x256xf32> to vector<32x256xf32>
    %5 = arith.addf %2, %4 : vector<32x256xf32>
    %c0_5 = arith.constant 0 : index
    %c0_6 = arith.constant 0 : index
    %6 = vector.load %arg5[%c0_5, %c0_6] : memref<32x256xf32, #tpu.memory_space<vmem>>, vector<32x256xf32>
    tpu.vector_store %arg5[%c0_5, %c0_6], %5 {strides = array<i32>} : memref<32x256xf32, #tpu.memory_space<vmem>>, vector<32x256xf32>,
    return
  }
  func.func @transform_0(%arg0: i32, %arg1: i32) -> (i32, i32) {
    %c0_i32 = arith.constant 0 : i32
    %c0_i32_0 = arith.constant 0 : i32
    return %arg0, %c0_i32 : i32, i32
  }
  func.func @transform_1(%arg0: i32, %arg1: i32) -> (i32, i32) {
    %c0_i32 = arith.constant 0 : i32
    %c0_i32_0 = arith.constant 0 : i32
    return %c0_i32, %arg1 : i32, i32
  }
  func.func @transform_2(%arg0: i32, %arg1: i32) -> (i32, i32) {
    %c0_i32 = arith.constant 0 : i32
    %c0_i32_0 = arith.constant 0 : i32
    return %c0_i32, %arg1 : i32, i32
  }
  func.func @transform_3(%arg0: i32, %arg1: i32) -> (i32, i32) {
    %c0_i32 = arith.constant 0 : i32
    return %arg0, %arg1 : i32, i32
  }
}

</mosaic_0001>

<llo_original>
// kernel: depthwise_separable_patch_embedding.1
$region0: #{depthwise_separable_patch_embedding.1}
  #allocation0 [shape = 'u32[]', space=smem, size = 0x4, offset = 0x4, fixed_abs, tag = 'smem constant byte address 0x4 - core index']
  #allocation1 [shape = 'u32[72,128]{1,0:T(1,128)}', space=vmem, size = 0x9000, scoped, tag = 'internal scratch']
  %s0 = inlined_call_operand.vmem [shape: bf16[32,768], index: 0, kind: input, shape index: {}]
  %s1 = inlined_call_operand.vmem [shape: bf16[768,256], index: 1, kind: input, shape index: {}]
  %s2 = inlined_call_operand.vmem [shape: f32[1,256], index: 2, kind: input, shape index: {}]
  %s3 = inlined_call_operand.hbm [shape: f32[32,256], index: 3, kind: output, shape index: {}]
  %s4 = sld [smem:[#allocation0]]
  $region22: #{depthwise_separable_patch_embedding.1} parent=0
    _
  %s6 = ssub.s32 1, %s4
  %s7 = scalar_select 0, %s6, %s4
  $region1: #{depthwise_separable_patch_embedding.1} parent=0
    #allocation2 [shape = 'u8[32768]{0}', space=vmem, size = 0x8000, scoped, tag = 'output window, operand 0, single buffered']
    #allocation3 [shape = 's32[1]{0}', space=sflag, size = 0x4, scoped, tag = 'scoped memory for depthwise_separable_patch_embedding.1']
    %8 = vsyncpa [#allocation3], 0
    // Predicated region
    $region2: #{depthwise_separable_patch_embedding.1} parent=1 // pred_check
      _
    $region3: #{depthwise_separable_patch_embedding.1} parent=1 // pred_check_branch
      %10 = sbr.rel (0) target = $region5
    $region4: #{depthwise_separable_patch_embedding.1} parent=1 // pred_region
      _
    $region5: #{depthwise_separable_patch_embedding.1} parent=1 // pred_fallthru
      _
    // Predicated region
    $region6: #{depthwise_separable_patch_embedding.1} parent=1 // pred_check
      _
    $region7: #{depthwise_separable_patch_embedding.1} parent=1 // pred_check_branch
      %12 = sbr.rel (0) target = $region9
    $region8: #{depthwise_separable_patch_embedding.1} parent=1 // pred_region
      _
    $region9: #{depthwise_separable_patch_embedding.1} parent=1 // pred_fallthru
      _
    // Predicated region
    $region10: #{depthwise_separable_patch_embedding.1} parent=1 // pred_check
      _
    $region11: #{depthwise_separable_patch_embedding.1} parent=1 // pred_check_branch
      %14 = sbr.rel (0) target = $region13
    $region12: #{depthwise_separable_patch_embedding.1} parent=1 // pred_region
      _
    $region13: #{depthwise_separable_patch_embedding.1} parent=1 // pred_fallthru
      _
    %v15 = vld [vmem:[%s0] sm:$0xff]
    %v16 = vld [vmem:[%s0 + $0x8] sm:$0xff]
    %v17 = vld [vmem:[%s0 + $0x10] sm:$0xff]
    %v18 = vld [vmem:[%s0 + $0x18] sm:$0xff]
    %v19 = vld [vmem:[%s0 + $0x20] sm:$0xff]
    %v20 = vld [vmem:[%s0 + $0x28] sm:$0xff]
    %v21 = vld [vmem:[%s0 + $0x30] sm:$0xff]
    %v22 = vld [vmem:[%s0 + $0x38] sm:$0xff]
    %v23 = vld [vmem:[%s0 + $0x40] sm:$0xff]
    %v24 = vld [vmem:[%s0 + $0x48] sm:$0xff]
    %v25 = vld [vmem:[%s0 + $0x50] sm:$0xff]
    %v26 = vld [vmem:[%s0 + $0x58] sm:$0xff]
    %v27 = vld [vmem:[%s1] sm:$0xff]
    %v28 = vld [vmem:[%s1 + $0x8] sm:$0xff]
    %v29 = vld [vmem:[%s1 + $0x10] sm:$0xff]
    %v30 = vld [vmem:[%s1 + $0x18] sm:$0xff]
    %v31 = vld [vmem:[%s1 + $0x20] sm:$0xff]
    %v32 = vld [vmem:[%s1 + $0x28] sm:$0xff]
    %v33 = vld [vmem:[%s1 + $0x30] sm:$0xff]
    %v34 = vld [vmem:[%s1 + $0x38] sm:$0xff]
    %v35 = vld [vmem:[%s1 + $0x40] sm:$0xff]
    %v36 = vld [vmem:[%s1 + $0x48] sm:$0xff]
    %v37 = vld [vmem:[%s1 + $0x50] sm:$0xff]
    %v38 = vld [vmem:[%s1 + $0x58] sm:$0xff]
    %v39 = vld [vmem:[%s1 + $0x60] sm:$0xff]
    %v40 = vld [vmem:[%s1 + $0x68] sm:$0xff]
    %v41 = vld [vmem:[%s1 + $0x70] sm:$0xff]
    %v42 = vld [vmem:[%s1 + $0x78] sm:$0xff]
    %v43 = vld [vmem:[%s1 + $0x80] sm:$0xff]
    %v44 = vld [vmem:[%s1 + $0x88] sm:$0xff]
    %v45 = vld [vmem:[%s1 + $0x90] sm:$0xff]
    %v46 = vld [vmem:[%s1 + $0x98] sm:$0xff]
    %v47 = vld [vmem:[%s1 + $0xa0] sm:$0xff]
    %v48 = vld [vmem:[%s1 + $0xa8] sm:$0xff]
    %v49 = vld [vmem:[%s1 + $0xb0] sm:$0xff]
    %v50 = vld [vmem:[%s1 + $0xb8] sm:$0xff]
    %v51 = vld [vmem:[%s1 + $0xc0] sm:$0xff]
    %v52 = vld [vmem:[%s1 + $0xc8] sm:$0xff]
    %v53 = vld [vmem:[%s1 + $0xd0] sm:$0xff]
    %v54 = vld [vmem:[%s1 + $0xd8] sm:$0xff]
    %v55 = vld [vmem:[%s1 + $0xe0] sm:$0xff]
    %v56 = vld [vmem:[%s1 + $0xe8] sm:$0xff]
    %v57 = vld [vmem:[%s1 + $0xf0] sm:$0xff]
    %v58 = vld [vmem:[%s1 + $0xf8] sm:$0xff]
    %v59 = vld [vmem:[%s1 + $0x100] sm:$0xff]
    %v60 = vld [vmem:[%s1 + $0x108] sm:$0xff]
    %v61 = vld [vmem:[%s1 + $0x110] sm:$0xff]
    %v62 = vld [vmem:[%s1 + $0x118] sm:$0xff]
    %v63 = vld [vmem:[%s1 + $0x120] sm:$0xff]
    %v64 = vld [vmem:[%s1 + $0x128] sm:$0xff]
    %v65 = vld [vmem:[%s1 + $0x130] sm:$0xff]
    %v66 = vld [vmem:[%s1 + $0x138] sm:$0xff]
    %v67 = vld [vmem:[%s1 + $0x140] sm:$0xff]
    %v68 = vld [vmem:[%s1 + $0x148] sm:$0xff]
    %v69 = vld [vmem:[%s1 + $0x150] sm:$0xff]
    %v70 = vld [vmem:[%s1 + $0x158] sm:$0xff]
    %v71 = vld [vmem:[%s1 + $0x160] sm:$0xff]
    %v72 = vld [vmem:[%s1 + $0x168] sm:$0xff]
    %v73 = vld [vmem:[%s1 + $0x170] sm:$0xff]
    %v74 = vld [vmem:[%s1 + $0x178] sm:$0xff]
    %v75 = vld [vmem:[%s1 + $0x180] sm:$0xff]
    %v76 = vld [vmem:[%s1 + $0x188] sm:$0xff]
    %v77 = vld [vmem:[%s1 + $0x190] sm:$0xff]
    %v78 = vld [vmem:[%s1 + $0x198] sm:$0xff]
    %v79 = vld [vmem:[%s1 + $0x1a0] sm:$0xff]
    %v80 = vld [vmem:[%s1 + $0x1a8] sm:$0xff]
    %v81 = vld [vmem:[%s1 + $0x1b0] sm:$0xff]
    %v82 = vld [vmem:[%s1 + $0x1b8] sm:$0xff]
    %v83 = vld [vmem:[%s1 + $0x1c0] sm:$0xff]
    %v84 = vld [vmem:[%s1 + $0x1c8] sm:$0xff]
    %v85 = vld [vmem:[%s1 + $0x1d0] sm:$0xff]
    %v86 = vld [vmem:[%s1 + $0x1d8] sm:$0xff]
    %v87 = vld [vmem:[%s1 + $0x1e0] sm:$0xff]
    %v88 = vld [vmem:[%s1 + $0x1e8] sm:$0xff]
    %v89 = vld [vmem:[%s1 + $0x1f0] sm:$0xff]
    %v90 = vld [vmem:[%s1 + $0x1f8] sm:$0xff]
    %v91 = vld [vmem:[%s1 + $0x200] sm:$0xff]
    %v92 = vld [vmem:[%s1 + $0x208] sm:$0xff]
    %v93 = vld [vmem:[%s1 + $0x210] sm:$0xff]
    %v94 = vld [vmem:[%s1 + $0x218] sm:$0xff]
    %v95 = vld [vmem:[%s1 + $0x220] sm:$0xff]
    %v96 = vld [vmem:[%s1 + $0x228] sm:$0xff]
    %v97 = vld [vmem:[%s1 + $0x230] sm:$0xff]
    %v98 = vld [vmem:[%s1 + $0x238] sm:$0xff]
    %v99 = vld [vmem:[%s1 + $0x240] sm:$0xff]
    %v100 = vld [vmem:[%s1 + $0x248] sm:$0xff]
    %v101 = vld [vmem:[%s1 + $0x250] sm:$0xff]
    %v102 = vld [vmem:[%s1 + $0x258] sm:$0xff]
    %v103 = vld [vmem:[%s1 + $0x260] sm:$0xff]
    %v104 = vld [vmem:[%s1 + $0x268] sm:$0xff]
    %v105 = vld [vmem:[%s1 + $0x270] sm:$0xff]
    %v106 = vld [vmem:[%s1 + $0x278] sm:$0xff]
    %v107 = vld [vmem:[%s1 + $0x280] sm:$0xff]
    %v108 = vld [vmem:[%s1 + $0x288] sm:$0xff]
    %v109 = vld [vmem:[%s1 + $0x290] sm:$0xff]
    %v110 = vld [vmem:[%s1 + $0x298] sm:$0xff]
    %v111 = vld [vmem:[%s1 + $0x2a0] sm:$0xff]
    %v112 = vld [vmem:[%s1 + $0x2a8] sm:$0xff]
    %v113 = vld [vmem:[%s1 + $0x2b0] sm:$0xff]
    %v114 = vld [vmem:[%s1 + $0x2b8] sm:$0xff]
    %v115 = vld [vmem:[%s1 + $0x2c0] sm:$0xff]
    %v116 = vld [vmem:[%s1 + $0x2c8] sm:$0xff]
    %v117 = vld [vmem:[%s1 + $0x2d0] sm:$0xff]
    %v118 = vld [vmem:[%s1 + $0x2d8] sm:$0xff]
    %v119 = vld [vmem:[%s1 + $0x2e0] sm:$0xff]
    %v120 = vld [vmem:[%s1 + $0x2e8] sm:$0xff]
    %v121 = vld [vmem:[%s1 + $0x2f0] sm:$0xff]
    %v122 = vld [vmem:[%s1 + $0x2f8] sm:$0xff]
    %v123 = vld [vmem:[%s2] sm:$0x3]
    %v125 = vperm.slane %v123, 0
    %v126 = vperm.slane %v123, 1
    %v141 = vunpack.c.l.b16 %v15
    %v142 = vunpack.c.h.b16 %v15
    %v143 = vunpack.c.l.b16 %v16
    %v144 = vunpack.c.h.b16 %v16
    %v145 = vunpack.c.l.b16 %v17
    %v146 = vunpack.c.h.b16 %v17
    %v147 = vunpack.c.l.b16 %v18
    %v148 = vunpack.c.h.b16 %v18
    %v149 = vunpack.c.l.b16 %v19
    %v150 = vunpack.c.h.b16 %v19
    %v151 = vunpack.c.l.b16 %v20
    %v152 = vunpack.c.h.b16 %v20
    %v153 = vunpack.c.l.b16 %v21
    %v154 = vunpack.c.h.b16 %v21
    %v155 = vunpack.c.l.b16 %v22
    %v156 = vunpack.c.h.b16 %v22
    %v157 = vunpack.c.l.b16 %v23
    %v158 = vunpack.c.h.b16 %v23
    %v159 = vunpack.c.l.b16 %v24
    %v160 = vunpack.c.h.b16 %v24
    %v161 = vunpack.c.l.b16 %v25
    %v162 = vunpack.c.h.b16 %v25
    %v163 = vunpack.c.l.b16 %v26
    %v164 = vunpack.c.h.b16 %v26
    %v165 = vpack.c.b16 %v147, %v141
    %v166 = vpack.c.b16 %v148, %v142
    %v167 = vpack.c.b16 %v149, %v143
    %v168 = vpack.c.b16 %v150, %v144
    %v169 = vpack.c.b16 %v151, %v145
    %v170 = vpack.c.b16 %v152, %v146
    %v171 = vpack.c.b16 %v159, %v153
    %v172 = vpack.c.b16 %v160, %v154
    %v173 = vpack.c.b16 %v161, %v155
    %v174 = vpack.c.b16 %v162, %v156
    %v175 = vpack.c.b16 %v163, %v157
    %v176 = vpack.c.b16 %v164, %v158
    %v285 = vunpack.c.l.b16 %v27
    %v286 = vunpack.c.h.b16 %v27
    %v287 = vunpack.c.l.b16 %v28
    %v288 = vunpack.c.h.b16 %v28
    %v289 = vunpack.c.l.b16 %v29
    %v290 = vunpack.c.h.b16 %v29
    %v291 = vunpack.c.l.b16 %v30
    %v292 = vunpack.c.h.b16 %v30
    %v293 = vunpack.c.l.b16 %v31
    %v294 = vunpack.c.h.b16 %v31
    %v295 = vunpack.c.l.b16 %v32
    %v296 = vunpack.c.h.b16 %v32
    %v297 = vunpack.c.l.b16 %v33
    %v298 = vunpack.c.h.b16 %v33
    %v299 = vunpack.c.l.b16 %v34
    %v300 = vunpack.c.h.b16 %v34
    %v301 = vunpack.c.l.b16 %v35
    %v302 = vunpack.c.h.b16 %v35
    %v303 = vunpack.c.l.b16 %v36
    %v304 = vunpack.c.h.b16 %v36
    %v305 = vunpack.c.l.b16 %v37
    %v306 = vunpack.c.h.b16 %v37
    %v307 = vunpack.c.l.b16 %v38
    %v308 = vunpack.c.h.b16 %v38
    %v309 = vunpack.c.l.b16 %v39
    %v310 = vunpack.c.h.b16 %v39
    %v311 = vunpack.c.l.b16 %v40
    %v312 = vunpack.c.h.b16 %v40
    %v313 = vunpack.c.l.b16 %v41
    %v314 = vunpack.c.h.b16 %v41
    %v315 = vunpack.c.l.b16 %v42
    %v316 = vunpack.c.h.b16 %v42
    %v317 = vunpack.c.l.b16 %v43
    %v318 = vunpack.c.h.b16 %v43
    %v319 = vunpack.c.l.b16 %v44
    %v320 = vunpack.c.h.b16 %v44
    %v321 = vunpack.c.l.b16 %v45
    %v322 = vunpack.c.h.b16 %v45
    %v323 = vunpack.c.l.b16 %v46
    %v324 = vunpack.c.h.b16 %v46
    %v325 = vunpack.c.l.b16 %v47
    %v326 = vunpack.c.h.b16 %v47
    %v327 = vunpack.c.l.b16 %v48
    %v328 = vunpack.c.h.b16 %v48
    %v329 = vunpack.c.l.b16 %v49
    %v330 = vunpack.c.h.b16 %v49
    %v331 = vunpack.c.l.b16 %v50
    %v332 = vunpack.c.h.b16 %v50
    %v333 = vunpack.c.l.b16 %v51
    %v334 = vunpack.c.h.b16 %v51
    %v335 = vunpack.c.l.b16 %v52
    %v336 = vunpack.c.h.b16 %v52
    %v337 = vunpack.c.l.b16 %v53
    %v338 = vunpack.c.h.b16 %v53
    %v339 = vunpack.c.l.b16 %v54
    %v340 = vunpack.c.h.b16 %v54
    %v341 = vunpack.c.l.b16 %v55
    %v342 = vunpack.c.h.b16 %v55
    %v343 = vunpack.c.l.b16 %v56
    %v344 = vunpack.c.h.b16 %v56
    %v345 = vunpack.c.l.b16 %v57
    %v346 = vunpack.c.h.b16 %v57
    %v347 = vunpack.c.l.b16 %v58
    %v348 = vunpack.c.h.b16 %v58
    %v349 = vunpack.c.l.b16 %v59
    %v350 = vunpack.c.h.b16 %v59
    %v351 = vunpack.c.l.b16 %v60
    %v352 = vunpack.c.h.b16 %v60
    %v353 = vunpack.c.l.b16 %v61
    %v354 = vunpack.c.h.b16 %v61
    %v355 = vunpack.c.l.b16 %v62
    %v356 = vunpack.c.h.b16 %v62
    %v357 = vunpack.c.l.b16 %v63
    %v358 = vunpack.c.h.b16 %v63
    %v359 = vunpack.c.l.b16 %v64
    %v360 = vunpack.c.h.b16 %v64
    %v361 = vunpack.c.l.b16 %v65
    %v362 = vunpack.c.h.b16 %v65
    %v363 = vunpack.c.l.b16 %v66
    %v364 = vunpack.c.h.b16 %v66
    %v365 = vunpack.c.l.b16 %v67
    %v366 = vunpack.c.h.b16 %v67
    %v367 = vunpack.c.l.b16 %v68
    %v368 = vunpack.c.h.b16 %v68
    %v369 = vunpack.c.l.b16 %v69
    %v370 = vunpack.c.h.b16 %v69
    %v371 = vunpack.c.l.b16 %v70
    %v372 = vunpack.c.h.b16 %v70
    %v373 = vunpack.c.l.b16 %v71
    %v374 = vunpack.c.h.b16 %v71
    %v375 = vunpack.c.l.b16 %v72
    %v376 = vunpack.c.h.b16 %v72
    %v377 = vunpack.c.l.b16 %v73
    %v378 = vunpack.c.h.b16 %v73
    %v379 = vunpack.c.l.b16 %v74
    %v380 = vunpack.c.h.b16 %v74
    %v381 = vunpack.c.l.b16 %v75
    %v382 = vunpack.c.h.b16 %v75
    %v383 = vunpack.c.l.b16 %v76
    %v384 = vunpack.c.h.b16 %v76
    %v385 = vunpack.c.l.b16 %v77
    %v386 = vunpack.c.h.b16 %v77
    %v387 = vunpack.c.l.b16 %v78
    %v388 = vunpack.c.h.b16 %v78
    %v389 = vunpack.c.l.b16 %v79
    %v390 = vunpack.c.h.b16 %v79
    %v391 = vunpack.c.l.b16 %v80
    %v392 = vunpack.c.h.b16 %v80
    %v393 = vunpack.c.l.b16 %v81
    %v394 = vunpack.c.h.b16 %v81
    %v395 = vunpack.c.l.b16 %v82
    %v396 = vunpack.c.h.b16 %v82
    %v397 = vunpack.c.l.b16 %v83
    %v398 = vunpack.c.h.b16 %v83
    %v399 = vunpack.c.l.b16 %v84
    %v400 = vunpack.c.h.b16 %v84
    %v401 = vunpack.c.l.b16 %v85
    %v402 = vunpack.c.h.b16 %v85
    %v403 = vunpack.c.l.b16 %v86
    %v404 = vunpack.c.h.b16 %v86
    %v405 = vunpack.c.l.b16 %v87
    %v406 = vunpack.c.h.b16 %v87
    %v407 = vunpack.c.l.b16 %v88
    %v408 = vunpack.c.h.b16 %v88
    %v409 = vunpack.c.l.b16 %v89
    %v410 = vunpack.c.h.b16 %v89
    %v411 = vunpack.c.l.b16 %v90
    %v412 = vunpack.c.h.b16 %v90
    %v413 = vunpack.c.l.b16 %v91
    %v414 = vunpack.c.h.b16 %v91
    %v415 = vunpack.c.l.b16 %v92
    %v416 = vunpack.c.h.b16 %v92
    %v417 = vunpack.c.l.b16 %v93
    %v418 = vunpack.c.h.b16 %v93
    %v419 = vunpack.c.l.b16 %v94
    %v420 = vunpack.c.h.b16 %v94
    %v421 = vunpack.c.l.b16 %v95
    %v422 = vunpack.c.h.b16 %v95
    %v423 = vunpack.c.l.b16 %v96
    %v424 = vunpack.c.h.b16 %v96
    %v425 = vunpack.c.l.b16 %v97
    %v426 = vunpack.c.h.b16 %v97
    %v427 = vunpack.c.l.b16 %v98
    %v428 = vunpack.c.h.b16 %v98
    %v429 = vunpack.c.l.b16 %v99
    %v430 = vunpack.c.h.b16 %v99
    %v431 = vunpack.c.l.b16 %v100
    %v432 = vunpack.c.h.b16 %v100
    %v433 = vunpack.c.l.b16 %v101
    %v434 = vunpack.c.h.b16 %v101
    %v435 = vunpack.c.l.b16 %v102
    %v436 = vunpack.c.h.b16 %v102
    %v437 = vunpack.c.l.b16 %v103
    %v438 = vunpack.c.h.b16 %v103
    %v439 = vunpack.c.l.b16 %v104
    %v440 = vunpack.c.h.b16 %v104
    %v441 = vunpack.c.l.b16 %v105
    %v442 = vunpack.c.h.b16 %v105
    %v443 = vunpack.c.l.b16 %v106
    %v444 = vunpack.c.h.b16 %v106
    %v445 = vunpack.c.l.b16 %v107
    %v446 = vunpack.c.h.b16 %v107
    %v447 = vunpack.c.l.b16 %v108
    %v448 = vunpack.c.h.b16 %v108
    %v449 = vunpack.c.l.b16 %v109
    %v450 = vunpack.c.h.b16 %v109
    %v451 = vunpack.c.l.b16 %v110
    %v452 = vunpack.c.h.b16 %v110
    %v453 = vunpack.c.l.b16 %v111
    %v454 = vunpack.c.h.b16 %v111
    %v455 = vunpack.c.l.b16 %v112
    %v456 = vunpack.c.h.b16 %v112
    %v457 = vunpack.c.l.b16 %v113
    %v458 = vunpack.c.h.b16 %v113
    %v459 = vunpack.c.l.b16 %v114
    %v460 = vunpack.c.h.b16 %v114
    %v461 = vunpack.c.l.b16 %v115
    %v462 = vunpack.c.h.b16 %v115
    %v463 = vunpack.c.l.b16 %v116
    %v464 = vunpack.c.h.b16 %v116
    %v465 = vunpack.c.l.b16 %v117
    %v466 = vunpack.c.h.b16 %v117
    %v467 = vunpack.c.l.b16 %v118
    %v468 = vunpack.c.h.b16 %v118
    %v469 = vunpack.c.l.b16 %v119
    %v470 = vunpack.c.h.b16 %v119
    %v471 = vunpack.c.l.b16 %v120
    %v472 = vunpack.c.h.b16 %v120
    %v473 = vunpack.c.l.b16 %v121
    %v474 = vunpack.c.h.b16 %v121
    %v475 = vunpack.c.l.b16 %v122
    %v476 = vunpack.c.h.b16 %v122
    %v477 = vpack.c.b16 %v287, %v285
    %v478 = vpack.c.b16 %v288, %v286
    %v479 = vpack.c.b16 %v291, %v289
    %v480 = vpack.c.b16 %v292, %v290
    %v481 = vpack.c.b16 %v295, %v293
    %v482 = vpack.c.b16 %v296, %v294
    %v483 = vpack.c.b16 %v299, %v297
    %v484 = vpack.c.b16 %v300, %v298
    %v485 = vpack.c.b16 %v303, %v301
    %v486 = vpack.c.b16 %v304, %v302
    %v487 = vpack.c.b16 %v307, %v305
    %v488 = vpack.c.b16 %v308, %v306
    %v489 = vpack.c.b16 %v311, %v309
    %v490 = vpack.c.b16 %v312, %v310
    %v491 = vpack.c.b16 %v315, %v313
    %v492 = vpack.c.b16 %v316, %v314
    %v493 = vpack.c.b16 %v319, %v317
    %v494 = vpack.c.b16 %v320, %v318
    %v495 = vpack.c.b16 %v323, %v321
    %v496 = vpack.c.b16 %v324, %v322
    %v497 = vpack.c.b16 %v327, %v325
    %v498 = vpack.c.b16 %v328, %v326
    %v499 = vpack.c.b16 %v331, %v329
    %v500 = vpack.c.b16 %v332, %v330
    %v501 = vpack.c.b16 %v335, %v333
    %v502 = vpack.c.b16 %v336, %v334
    %v503 = vpack.c.b16 %v339, %v337
    %v504 = vpack.c.b16 %v340, %v338
    %v505 = vpack.c.b16 %v343, %v341
    %v506 = vpack.c.b16 %v344, %v342
    %v507 = vpack.c.b16 %v347, %v345
    %v508 = vpack.c.b16 %v348, %v346
    %v509 = vpack.c.b16 %v351, %v349
    %v510 = vpack.c.b16 %v352, %v350
    %v511 = vpack.c.b16 %v355, %v353
    %v512 = vpack.c.b16 %v356, %v354
    %v513 = vpack.c.b16 %v359, %v357
    %v514 = vpack.c.b16 %v360, %v358
    %v515 = vpack.c.b16 %v363, %v361
    %v516 = vpack.c.b16 %v364, %v362
    %v517 = vpack.c.b16 %v367, %v365
    %v518 = vpack.c.b16 %v368, %v366
    %v519 = vpack.c.b16 %v371, %v369
    %v520 = vpack.c.b16 %v372, %v370
    %v521 = vpack.c.b16 %v375, %v373
    %v522 = vpack.c.b16 %v376, %v374
    %v523 = vpack.c.b16 %v379, %v377
    %v524 = vpack.c.b16 %v380, %v378
    %v525 = vpack.c.b16 %v383, %v381
    %v526 = vpack.c.b16 %v384, %v382
    %v527 = vpack.c.b16 %v387, %v385
    %v528 = vpack.c.b16 %v388, %v386
    %v529 = vpack.c.b16 %v391, %v389
    %v530 = vpack.c.b16 %v392, %v390
    %v531 = vpack.c.b16 %v395, %v393
    %v532 = vpack.c.b16 %v396, %v394
    %v533 = vpack.c.b16 %v399, %v397
    %v534 = vpack.c.b16 %v400, %v398
    %v535 = vpack.c.b16 %v403, %v401
    %v536 = vpack.c.b16 %v404, %v402
    %v537 = vpack.c.b16 %v407, %v405
    %v538 = vpack.c.b16 %v408, %v406
    %v539 = vpack.c.b16 %v411, %v409
    %v540 = vpack.c.b16 %v412, %v410
    %v541 = vpack.c.b16 %v415, %v413
    %v542 = vpack.c.b16 %v416, %v414
    %v543 = vpack.c.b16 %v419, %v417
    %v544 = vpack.c.b16 %v420, %v418
    %v545 = vpack.c.b16 %v423, %v421
    %v546 = vpack.c.b16 %v424, %v422
    %v547 = vpack.c.b16 %v427, %v425
    %v548 = vpack.c.b16 %v428, %v426
    %v549 = vpack.c.b16 %v431, %v429
    %v550 = vpack.c.b16 %v432, %v430
    %v551 = vpack.c.b16 %v435, %v433
    %v552 = vpack.c.b16 %v436, %v434
    %v553 = vpack.c.b16 %v439, %v437
    %v554 = vpack.c.b16 %v440, %v438
    %v555 = vpack.c.b16 %v443, %v441
    %v556 = vpack.c.b16 %v444, %v442
    %v557 = vpack.c.b16 %v447, %v445
    %v558 = vpack.c.b16 %v448, %v446
    %v559 = vpack.c.b16 %v451, %v449
    %v560 = vpack.c.b16 %v452, %v450
    %v561 = vpack.c.b16 %v455, %v453
    %v562 = vpack.c.b16 %v456, %v454
    %v563 = vpack.c.b16 %v459, %v457
    %v564 = vpack.c.b16 %v460, %v458
    %v565 = vpack.c.b16 %v463, %v461
    %v566 = vpack.c.b16 %v464, %v462
    %v567 = vpack.c.b16 %v467, %v465
    %v568 = vpack.c.b16 %v468, %v466
    %v569 = vpack.c.b16 %v471, %v469
    %v570 = vpack.c.b16 %v472, %v470
    %v571 = vpack.c.b16 %v475, %v473
    %v572 = vpack.c.b16 %v476, %v474
    %669 = vmatpush.bf16.msra.mxu0 %v491
    %670 = vmatpush.bf16.msra.mxu0 %v489
    %671 = vmatpush.bf16.msra.mxu0 %v487
    %672 = vmatpush.bf16.msra.mxu0 %v485
    %673 = vmatpush.bf16.msra.mxu0 %v483
    %674 = vmatpush.bf16.msra.mxu0 %v481
    %675 = vmatpush.bf16.msra.mxu0 %v479
    %676 = vmatpush.bf16.msra.mxu0 %v477
    %677 = vmatmul.bf16.gmra.mxu0 %v165
    %v678 = vpop.f32.mrf.mxu0
    %v679 = vadd.f32 %v125, %v678
    %v680 = vpop.f32.mrf.mxu0
    %v681 = vadd.f32 %v125, %v680
    %682 = vmatmul.bf16.gmra.mxu0 %v171
    %v683 = vpop.f32.mrf.mxu0
    %v684 = vadd.f32 %v125, %v683
    %v685 = vpop.f32.mrf.mxu0
    %v686 = vadd.f32 %v125, %v685
    %687 = vdwg.mxu0
    %688 = vmatpush.bf16.msra.mxu0 %v507
    %689 = vmatpush.bf16.msra.mxu0 %v505
    %690 = vmatpush.bf16.msra.mxu0 %v503
    %691 = vmatpush.bf16.msra.mxu0 %v501
    %692 = vmatpush.bf16.msra.mxu0 %v499
    %693 = vmatpush.bf16.msra.mxu0 %v497
    %694 = vmatpush.bf16.msra.mxu0 %v495
    %695 = vmatpush.bf16.msra.mxu0 %v493
    %696 = vmatmul.bf16.gmra.mxu0 %v166
    %v697 = vpop.f32.mrf.mxu0
    %v698 = vadd.f32 %v679, %v697
    %v699 = vpop.f32.mrf.mxu0
    %v700 = vadd.f32 %v681, %v699
    %701 = vmatmul.bf16.gmra.mxu0 %v172
    %v702 = vpop.f32.mrf.mxu0
    %v703 = vadd.f32 %v684, %v702
    %v704 = vpop.f32.mrf.mxu0
    %v705 = vadd.f32 %v686, %v704
    %706 = vdwg.mxu0
    %707 = vmatpush.bf16.msra.mxu0 %v523
    %708 = vmatpush.bf16.msra.mxu0 %v521
    %709 = vmatpush.bf16.msra.mxu0 %v519
    %710 = vmatpush.bf16.msra.mxu0 %v517
    %711 = vmatpush.bf16.msra.mxu0 %v515
    %712 = vmatpush.bf16.msra.mxu0 %v513
    %713 = vmatpush.bf16.msra.mxu0 %v511
    %714 = vmatpush.bf16.msra.mxu0 %v509
    %715 = vmatmul.bf16.gmra.mxu0 %v167
    %v716 = vpop.f32.mrf.mxu0
    %v717 = vadd.f32 %v698, %v716
    %v718 = vpop.f32.mrf.mxu0
    %v719 = vadd.f32 %v700, %v718
    %720 = vmatmul.bf16.gmra.mxu0 %v173
    %v721 = vpop.f32.mrf.mxu0
    %v722 = vadd.f32 %v703, %v721
    %v723 = vpop.f32.mrf.mxu0
    %v724 = vadd.f32 %v705, %v723
    %725 = vdwg.mxu0
    %726 = vmatpush.bf16.msra.mxu0 %v539
    %727 = vmatpush.bf16.msra.mxu0 %v537
    %728 = vmatpush.bf16.msra.mxu0 %v535
    %729 = vmatpush.bf16.msra.mxu0 %v533
    %730 = vmatpush.bf16.msra.mxu0 %v531
    %731 = vmatpush.bf16.msra.mxu0 %v529
    %732 = vmatpush.bf16.msra.mxu0 %v527
    %733 = vmatpush.bf16.msra.mxu0 %v525
    %734 = vmatmul.bf16.gmra.mxu0 %v168
    %v735 = vpop.f32.mrf.mxu0
    %v736 = vadd.f32 %v717, %v735
    %v737 = vpop.f32.mrf.mxu0
    %v738 = vadd.f32 %v719, %v737
    %739 = vmatmul.bf16.gmra.mxu0 %v174
    %v740 = vpop.f32.mrf.mxu0
    %v741 = vadd.f32 %v722, %v740
    %v742 = vpop.f32.mrf.mxu0
    %v743 = vadd.f32 %v724, %v742
    %744 = vdwg.mxu0
    %745 = vmatpush.bf16.msra.mxu0 %v555
    %746 = vmatpush.bf16.msra.mxu0 %v553
    %747 = vmatpush.bf16.msra.mxu0 %v551
    %748 = vmatpush.bf16.msra.mxu0 %v549
    %749 = vmatpush.bf16.msra.mxu0 %v547
    %750 = vmatpush.bf16.msra.mxu0 %v545
    %751 = vmatpush.bf16.msra.mxu0 %v543
    %752 = vmatpush.bf16.msra.mxu0 %v541
    %753 = vmatmul.bf16.gmra.mxu0 %v169
    %v754 = vpop.f32.mrf.mxu0
    %v755 = vadd.f32 %v736, %v754
    %v756 = vpop.f32.mrf.mxu0
    %v757 = vadd.f32 %v738, %v756
    %758 = vmatmul.bf16.gmra.mxu0 %v175
    %v759 = vpop.f32.mrf.mxu0
    %v760 = vadd.f32 %v741, %v759
    %v761 = vpop.f32.mrf.mxu0
    %v762 = vadd.f32 %v743, %v761
    %763 = vdwg.mxu0
    %764 = vmatpush.bf16.msra.mxu0 %v571
    %765 = vmatpush.bf16.msra.mxu0 %v569
    %766 = vmatpush.bf16.msra.mxu0 %v567
    %767 = vmatpush.bf16.msra.mxu0 %v565
    %768 = vmatpush.bf16.msra.mxu0 %v563
    %769 = vmatpush.bf16.msra.mxu0 %v561
    %770 = vmatpush.bf16.msra.mxu0 %v559
    %771 = vmatpush.bf16.msra.mxu0 %v557
    %772 = vmatmul.bf16.gmra.mxu0 %v170
    %v773 = vpop.f32.mrf.mxu0
    %v774 = vadd.f32 %v755, %v773
    %v775 = vpop.f32.mrf.mxu0
    %v776 = vadd.f32 %v757, %v775
    %777 = vmatmul.bf16.gmra.mxu0 %v176
    %v778 = vpop.f32.mrf.mxu0
    %v779 = vadd.f32 %v760, %v778
    %v780 = vpop.f32.mrf.mxu0
    %v781 = vadd.f32 %v762, %v780
    %782 = vdwg.mxu0
    %783 = vmatpush.bf16.msra.mxu0 %v492
    %784 = vmatpush.bf16.msra.mxu0 %v490
    %785 = vmatpush.bf16.msra.mxu0 %v488
    %786 = vmatpush.bf16.msra.mxu0 %v486
    %787 = vmatpush.bf16.msra.mxu0 %v484
    %788 = vmatpush.bf16.msra.mxu0 %v482
    %789 = vmatpush.bf16.msra.mxu0 %v480
    %790 = vmatpush.bf16.msra.mxu0 %v478
    %791 = vmatmul.bf16.gmra.mxu0 %v165
    %v792 = vpop.f32.mrf.mxu0
    %v793 = vadd.f32 %v126, %v792
    %v794 = vpop.f32.mrf.mxu0
    %v795 = vadd.f32 %v126, %v794
    %796 = vmatmul.bf16.gmra.mxu0 %v171
    %v797 = vpop.f32.mrf.mxu0
    %v798 = vadd.f32 %v126, %v797
    %v799 = vpop.f32.mrf.mxu0
    %v800 = vadd.f32 %v126, %v799
    %801 = vdwg.mxu0
    %802 = vmatpush.bf16.msra.mxu0 %v508
    %803 = vmatpush.bf16.msra.mxu0 %v506
    %804 = vmatpush.bf16.msra.mxu0 %v504
    %805 = vmatpush.bf16.msra.mxu0 %v502
    %806 = vmatpush.bf16.msra.mxu0 %v500
    %807 = vmatpush.bf16.msra.mxu0 %v498
    %808 = vmatpush.bf16.msra.mxu0 %v496
    %809 = vmatpush.bf16.msra.mxu0 %v494
    %810 = vmatmul.bf16.gmra.mxu0 %v166
    %v811 = vpop.f32.mrf.mxu0
    %v812 = vadd.f32 %v793, %v811
    %v813 = vpop.f32.mrf.mxu0
    %v814 = vadd.f32 %v795, %v813
    %815 = vmatmul.bf16.gmra.mxu0 %v172
    %v816 = vpop.f32.mrf.mxu0
    %v817 = vadd.f32 %v798, %v816
    %v818 = vpop.f32.mrf.mxu0
    %v819 = vadd.f32 %v800, %v818
    %820 = vdwg.mxu0
    %821 = vmatpush.bf16.msra.mxu0 %v524
    %822 = vmatpush.bf16.msra.mxu0 %v522
    %823 = vmatpush.bf16.msra.mxu0 %v520
    %824 = vmatpush.bf16.msra.mxu0 %v518
    %825 = vmatpush.bf16.msra.mxu0 %v516
    %826 = vmatpush.bf16.msra.mxu0 %v514
    %827 = vmatpush.bf16.msra.mxu0 %v512
    %828 = vmatpush.bf16.msra.mxu0 %v510
    %829 = vmatmul.bf16.gmra.mxu0 %v167
    %v830 = vpop.f32.mrf.mxu0
    %v831 = vadd.f32 %v812, %v830
    %v832 = vpop.f32.mrf.mxu0
    %v833 = vadd.f32 %v814, %v832
    %834 = vmatmul.bf16.gmra.mxu0 %v173
    %v835 = vpop.f32.mrf.mxu0
    %v836 = vadd.f32 %v817, %v835
    %v837 = vpop.f32.mrf.mxu0
    %v838 = vadd.f32 %v819, %v837
    %839 = vdwg.mxu0
    %840 = vmatpush.bf16.msra.mxu0 %v540
    %841 = vmatpush.bf16.msra.mxu0 %v538
    %842 = vmatpush.bf16.msra.mxu0 %v536
    %843 = vmatpush.bf16.msra.mxu0 %v534
    %844 = vmatpush.bf16.msra.mxu0 %v532
    %845 = vmatpush.bf16.msra.mxu0 %v530
    %846 = vmatpush.bf16.msra.mxu0 %v528
    %847 = vmatpush.bf16.msra.mxu0 %v526
    %848 = vmatmul.bf16.gmra.mxu0 %v168
    %v849 = vpop.f32.mrf.mxu0
    %v850 = vadd.f32 %v831, %v849
    %v851 = vpop.f32.mrf.mxu0
    %v852 = vadd.f32 %v833, %v851
    %853 = vmatmul.bf16.gmra.mxu0 %v174
    %v854 = vpop.f32.mrf.mxu0
    %v855 = vadd.f32 %v836, %v854
    %v856 = vpop.f32.mrf.mxu0
    %v857 = vadd.f32 %v838, %v856
    %858 = vdwg.mxu0
    %859 = vmatpush.bf16.msra.mxu0 %v556
    %860 = vmatpush.bf16.msra.mxu0 %v554
    %861 = vmatpush.bf16.msra.mxu0 %v552
    %862 = vmatpush.bf16.msra.mxu0 %v550
    %863 = vmatpush.bf16.msra.mxu0 %v548
    %864 = vmatpush.bf16.msra.mxu0 %v546
    %865 = vmatpush.bf16.msra.mxu0 %v544
    %866 = vmatpush.bf16.msra.mxu0 %v542
    %867 = vmatmul.bf16.gmra.mxu0 %v169
    %v868 = vpop.f32.mrf.mxu0
    %v869 = vadd.f32 %v850, %v868
    %v870 = vpop.f32.mrf.mxu0
    %v871 = vadd.f32 %v852, %v870
    %872 = vmatmul.bf16.gmra.mxu0 %v175
    %v873 = vpop.f32.mrf.mxu0
    %v874 = vadd.f32 %v855, %v873
    %v875 = vpop.f32.mrf.mxu0
    %v876 = vadd.f32 %v857, %v875
    %877 = vdwg.mxu0
    %878 = vmatpush.bf16.msra.mxu0 %v572
    %879 = vmatpush.bf16.msra.mxu0 %v570
    %880 = vmatpush.bf16.msra.mxu0 %v568
    %881 = vmatpush.bf16.msra.mxu0 %v566
    %882 = vmatpush.bf16.msra.mxu0 %v564
    %883 = vmatpush.bf16.msra.mxu0 %v562
    %884 = vmatpush.bf16.msra.mxu0 %v560
    %885 = vmatpush.bf16.msra.mxu0 %v558
    %886 = vmatmul.bf16.gmra.mxu0 %v170
    %v887 = vpop.f32.mrf.mxu0
    %v888 = vadd.f32 %v869, %v887
    %v889 = vpop.f32.mrf.mxu0
    %v890 = vadd.f32 %v871, %v889
    %891 = vmatmul.bf16.gmra.mxu0 %v176
    %v892 = vpop.f32.mrf.mxu0
    %v893 = vadd.f32 %v874, %v892
    %v894 = vpop.f32.mrf.mxu0
    %v895 = vadd.f32 %v876, %v894
    %896 = vdwg.mxu0
    %897 = vst [vmem:[#allocation2] sm:$0xff] %v774
    %898 = vst [vmem:[#allocation2 + $0x8] sm:$0xff] %v888
    %899 = vst [vmem:[#allocation2 + $0x10] sm:$0xff] %v776
    %900 = vst [vmem:[#allocation2 + $0x18] sm:$0xff] %v890
    %901 = vst [vmem:[#allocation2 + $0x20] sm:$0xff] %v779
    %902 = vst [vmem:[#allocation2 + $0x28] sm:$0xff] %v893
    %903 = vst [vmem:[#allocation2 + $0x30] sm:$0xff] %v781
    %904 = vst [vmem:[#allocation2 + $0x38] sm:$0xff] %v895
    // Predicated region
    $region14: #{depthwise_separable_patch_embedding.1} parent=1 // pred_check
      _
    $region15: #{depthwise_separable_patch_embedding.1} parent=1 // pred_check_branch
      %906 = sbr.rel (0) target = $region17
    $region16: #{depthwise_separable_patch_embedding.1} parent=1 // pred_region
      %908 = vsyncadd [#allocation3], 0
      %s909 = sshll.u32 [#allocation2], 4
      %s910 = int_to_ptr.vmem [resolvable:$true] %s909
      %s911 = sshll.u32 %s3, 4
      %s912 = int_to_ptr.hbm [resolvable:$true] %s911
      %917 = dma.vmem_to_hbm [thread:$0]  %s910, 1024, %s912, [#allocation3], 256, 256, 16
    $region17: #{depthwise_separable_patch_embedding.1} parent=1 // pred_fallthru
      _
    // Predicated region
    $region18: #{depthwise_separable_patch_embedding.1} parent=1 // pred_check
      _
    $region19: #{depthwise_separable_patch_embedding.1} parent=1 // pred_check_branch
      %919 = sbr.rel (0) target = $region21
    $region20: #{depthwise_separable_patch_embedding.1} parent=1 // pred_region
      %921 = dma.done [#allocation3], 1024
    $region21: #{depthwise_separable_patch_embedding.1} parent=1 // pred_fallthru
      _
    %922 = vsyncpa [#allocation3], 1

</llo_original>
